<compile_context>
chip_gen: v7x
topology: tpu7x:2x2x1
jax: 0.10.0
libtpu: 0.0.40
codegen_flags: <defaults>
</compile_context>

<pallas_src>
import jax
import jax.numpy as jnp
import numpy as np
from jax.experimental import pallas as pl
from jax.experimental.pallas import tpu as pltpu


def _down_conv_kernel(xe_ref, xo_ref, w_ref, b_ref, o_ref):
    """One (batch, row-tile) step: 3x3 / stride-2 conv as 3 kw-fused MXU dots.

    xe_ref: (th+1, Wp, 3C)  even input rows of this tile + one halo row
    xo_ref: (th,   Wp, 3C)  odd  input rows of this tile
    w_ref : (3, 3C, C)      per-kh (kw,Cin)-fused weights (VMEM resident)
    b_ref : (1, C)          bias (f32)
    o_ref : (th, Wp, C)
    """
    th, Wp, C = o_ref.shape
    K = 3 * C
    M = th * Wp

    xe = xe_ref[...]                              # (th+1, Wp, 3C), loaded once
    x0 = xe[:th].reshape(M, K)                    # kh == 0 rows
    x2 = xe[1:].reshape(M, K)                     # kh == 2 rows (halo gives the +1 shift)
    x1 = xo_ref[...].reshape(M, K)                # kh == 1 rows

    acc = jnp.dot(x0, w_ref[0], preferred_element_type=jnp.float32)
    acc = acc + jnp.dot(x1, w_ref[1], preferred_element_type=jnp.float32)
    acc = acc + jnp.dot(x2, w_ref[2], preferred_element_type=jnp.float32)
    acc = acc + b_ref[...]                        # (1, C) f32 broadcast
    o_ref[...] = acc.reshape(th, Wp, C).astype(o_ref.dtype)


def _vmem_budget():
    """(data budget for picking the row tile, vmem_limit_bytes) — generation aware."""
    cap = 64 << 20                                # conservative fallback (v7x physical)
    try:
        cap = int(pltpu.get_tpu_info().vmem_capacity_bytes) or cap
    except Exception:
        pass
    vmem_limit = min(int(cap * 0.75), 100 << 20)  # ~96 MiB on v5e/v6e, ~48 MiB on v7x
    return int(vmem_limit * 0.6), vmem_limit


def _pick_row_tile(N, Ho, Wp, C, itemsize, budget):
    """Largest row tile whose double-buffered working set fits `budget`."""
    wbytes = 2 * (9 * C * C * itemsize + C * 4)   # resident weights + f32 bias (2-deep)

    def cost(th):
        in_b = (2 * th + 1) * Wp * 3 * C * itemsize   # even (th+1) + odd (th) blocks
        out_b = th * Wp * C * itemsize
        acc_b = 2 * th * Wp * C * 4                   # f32 accumulator + temp headroom
        return 2 * (in_b + out_b) + acc_b + wbytes

    th = 1
    for cand in range(min(Ho, 1024), 0, -1):
        if cost(cand) <= budget:
            th = cand
            break
    # v7x has 2 TensorCores: prefer an even number of parallel grid steps.
    if (N * pl.cdiv(Ho, th)) % 2 == 1 and Ho > 1:
        for cand in range(th, max(th // 2, 1) - 1, -1):
            if (N * pl.cdiv(Ho, cand)) % 2 == 0:
                th = cand
                break
    return th


@jax.jit
def downsample(x_nchw, weight_oihw, bias):
    """Downsample.forward: pad (0,1,0,1) then Conv2d(C, C, 3, stride=2, pad=0)."""
    N, C, H, W = x_nchw.shape
    assert weight_oihw.shape == (C, C, 3, 3)
    assert H >= 2 and W >= 2
    Ho, Wo = H // 2, W // 2
    dtype = x_nchw.dtype
    itemsize = jnp.dtype(dtype).itemsize
    pack = 8 * max(1, 4 // itemsize)              # sublane pack: f32 -> 8, bf16 -> 16
    Wp = ((Wo + pack - 1) // pack) * pack         # plane width, reshape/store aligned

    budget, vmem_limit = _vmem_budget()
    th = _pick_row_tile(N, Ho, Wp, C, itemsize, budget)
    R = pl.cdiv(Ho, th)
    Hr = R * th                                   # Ho padded to a whole number of tiles

    # ---- single fused pre-pass: NCHW -> kw-fused, row-parity-split planes ----
    # TODO(synk): if the surrounding model kept NHWC activations this transpose
    # (and the final one) would disappear; for small C the op is HBM-bound and
    # folding this pre-pass into the kernel via strided manual DMA is the next win.
    x = jnp.transpose(x_nchw, (0, 2, 3, 1))                       # NHWC
    Hin, Win = 2 * Hr + 1, 2 * Wp + 1
    x = jnp.pad(x, ((0, 0), (0, Hin - H), (0, Win - W), (0, 0)))  # zero pad (incl. (0,1,0,1))
    # cols[n, h, ow, kw*C + c] == xpad[n, h, 2*ow + kw, c]
    cols = jnp.concatenate([x[:, :, k:k + 2 * Wp:2, :] for k in range(3)], axis=-1)
    evn = cols[:, 0:2 * Hr + 1:2]                                 # (N, Hr+1, Wp, 3C)
    odd = cols[:, 1:2 * Hr:2]                                     # (N, Hr,   Wp, 3C)
    # even rows per row-tile with a one-row halo (duplicates R rows, ~1/th overhead)
    evn_t = jnp.concatenate(
        [evn[:, :Hr].reshape(N, R, th, Wp, 3 * C), evn[:, th::th][:, :, None]],
        axis=2)                                                   # (N, R, th+1, Wp, 3C)

    # weights: OIHW -> (kh, kw*Cin, Cout); kept in the model dtype (bf16 stays bf16).
    w_fused = jnp.transpose(weight_oihw, (2, 3, 1, 0)).reshape(3, 3 * C, C).astype(dtype)
    b2 = bias.astype(jnp.float32).reshape(1, C)

    out = pl.pallas_call(
        _down_conv_kernel,
        out_shape=jax.ShapeDtypeStruct((N, Hr, Wp, C), dtype),
        grid_spec=pltpu.PrefetchScalarGridSpec(
            num_scalar_prefetch=0,
            grid=(N, R),
            in_specs=[
                pl.BlockSpec((None, None, th + 1, Wp, 3 * C),
                             lambda n, r: (n, r, 0, 0, 0)),
                pl.BlockSpec((None, th, Wp, 3 * C), lambda n, r: (n, r, 0, 0)),
                # weights & bias: constant index maps -> fetched once, VMEM resident.
                # TODO(synk): pipeline_mode=pl.Buffered(1) would drop the second weight
                # buffer on v7x; the VMEM budget above accounts for the 2-deep default.
                pl.BlockSpec((3, 3 * C, C), lambda n, r: (0, 0, 0)),
                pl.BlockSpec((1, C), lambda n, r: (0, 0)),
            ],
            out_specs=pl.BlockSpec((None, th, Wp, C), lambda n, r: (n, r, 0, 0)),
        ),
        compiler_params=pltpu.CompilerParams(
            dimension_semantics=("parallel", "parallel"),
            vmem_limit_bytes=vmem_limit),
    )(evn_t, odd, w_fused, b2)

    return jnp.transpose(out[:, :Ho, :Wo, :], (0, 3, 1, 2))       # crop pad, back to NCHW


if __name__ == "__main__":
    def _reference(x_nchw, weight_oihw, bias):
        xp = jnp.pad(x_nchw, ((0, 0), (0, 0), (0, 1), (0, 1)))
        y = jax.lax.conv_general_dilated(
            xp, weight_oihw, window_strides=(2, 2), padding="VALID",
            dimension_numbers=("NCHW", "OIHW", "NCHW"))
        return y + bias.reshape(1, -1, 1, 1)

    key = jax.random.PRNGKey(0)
    configs = [
        # (N, C, H, W, dtype, rtol, atol)
        (2, 4, 16, 16, jnp.float32, 1e-4, 1e-4),     # required small config
        (1, 8, 15, 13, jnp.float32, 1e-4, 1e-4),     # odd H/W, N=1, padded Ho, even-R split
        (2, 16, 12, 20, jnp.bfloat16, 2e-2, 2e-2),   # bf16 (sublane pack 16) path
    ]
    for (N, C, H, W, dt, rtol, atol) in configs:
        key, kx, kw, kb = jax.random.split(key, 4)
        x = jax.random.normal(kx, (N, C, H, W), dtype=jnp.float32).astype(dt)
        weight = (jax.random.normal(kw, (C, C, 3, 3), dtype=jnp.float32) * 0.1).astype(dt)
        b = (jax.random.normal(kb, (C,), dtype=jnp.float32) * 0.1).astype(dt)

        out = jax.block_until_ready(downsample(x, weight, b))
        ref = _reference(x.astype(jnp.float32), weight.astype(jnp.float32),
                         b.astype(jnp.float32)).astype(dt)
        ref = jax.block_until_ready(ref)

        assert out.shape == (N, C, H // 2, W // 2), out.shape
        np.testing.assert_allclose(np.asarray(out, dtype=np.float32),
                                   np.asarray(ref, dtype=np.float32),
                                   rtol=rtol, atol=atol)
    print("KERNEL_OK")
</pallas_src>

<mosaic_0001>
module attributes {stable_mosaic.version = 11 : i64} {
  func.func @_down_conv_kernel(%arg0: i32, %arg1: i32, %arg2: memref<1x1x9x8x12xf32, #tpu.memory_space<vmem>>, %arg3: memref<1x8x8x12xf32, #tpu.memory_space<vmem>>, %arg4: memref<3x12x4xf32, #tpu.memory_space<vmem>>, %arg5: memref<1x4xf32, #tpu.memory_space<vmem>>, %arg6: memref<1x8x8x4xf32, #tpu.memory_space<vmem>>) attributes {dimension_semantics = [#tpu.dimension_semantics<parallel>, #tpu.dimension_semantics<parallel>], iteration_bounds = array<i64: 2, 1>, scalar_prefetch = 0 : i64, scratch_operands = 0 : i64, tpu.core_type = #tpu.core_type<tc>, window_params = [{transform_indices = @transform_0, window_bounds = array<i64: 1, 1, 9, 8, 12>}, {transform_indices = @transform_1, window_bounds = array<i64: 1, 8, 8, 12>}, {pipeline_mode = #tpu.pipeline_mode<synchronous>, transform_indices = @transform_2, window_bounds = array<i64: 3, 12, 4>}, {pipeline_mode = #tpu.pipeline_mode<synchronous>, transform_indices = @transform_3, window_bounds = array<i64: 1, 4>}, {transform_indices = @transform_4, window_bounds = array<i64: 1, 8, 8, 4>}]} {
    %c0 = arith.constant 0 : index
    %c0_0 = arith.constant 0 : index
    %c0_1 = arith.constant 0 : index
    %c0_2 = arith.constant 0 : index
    %c0_3 = arith.constant 0 : index
    %0 = vector.load %arg2[%c0, %c0_0, %c0_1, %c0_2, %c0_3] : memref<1x1x9x8x12xf32, #tpu.memory_space<vmem>>, vector<1x1x9x8x12xf32>
    %1 = vector.shape_cast %0 : vector<1x1x9x8x12xf32> to vector<9x8x12xf32>
    %2 = vector.extract_strided_slice %1 {offsets = [0, 0, 0], sizes = [8, 8, 12], strides = [1, 1, 1]} : vector<9x8x12xf32> to vector<8x8x12xf32>
    %3 = vector.shape_cast %2 : vector<8x8x12xf32> to vector<64x12xf32>
    %4 = vector.extract_strided_slice %1 {offsets = [1, 0, 0], sizes = [8, 8, 12], strides = [1, 1, 1]} : vector<9x8x12xf32> to vector<8x8x12xf32>
    %5 = vector.shape_cast %4 : vector<8x8x12xf32> to vector<64x12xf32>
    %c0_4 = arith.constant 0 : index
    %c0_5 = arith.constant 0 : index
    %c0_6 = arith.constant 0 : index
    %c0_7 = arith.constant 0 : index
    %6 = vector.load %arg3[%c0_4, %c0_5, %c0_6, %c0_7] : memref<1x8x8x12xf32, #tpu.memory_space<vmem>>, vector<1x8x8x12xf32>
    %7 = vector.shape_cast %6 : vector<1x8x8x12xf32> to vector<8x8x12xf32>
    %8 = vector.shape_cast %7 : vector<8x8x12xf32> to vector<64x12xf32>
    %c0_8 = arith.constant 0 : index
    %c0_9 = arith.constant 0 : index
    %c0_10 = arith.constant 0 : index
    %9 = vector.load %arg4[%c0_8, %c0_9, %c0_10] : memref<3x12x4xf32, #tpu.memory_space<vmem>>, vector<1x12x4xf32>
    %10 = vector.shape_cast %9 : vector<1x12x4xf32> to vector<12x4xf32>
    %cst = arith.constant dense<0.000000e+00> : vector<64x4xf32>
    %11 = tpu.matmul %3, %10, %cst {dimension_numbers = #tpu.dot_dimension_numbers<[1], [0], [0], [1], [0, 0, 1, 1], [], []>} : vector<64x12xf32>, vector<12x4xf32>, vector<64x4xf32> -> vector<64x4xf32>
    %c1 = arith.constant 1 : index
    %c0_11 = arith.constant 0 : index
    %c0_12 = arith.constant 0 : index
    %12 = vector.load %arg4[%c1, %c0_11, %c0_12] : memref<3x12x4xf32, #tpu.memory_space<vmem>>, vector<1x12x4xf32>
    %13 = vector.shape_cast %12 : vector<1x12x4xf32> to vector<12x4xf32>
    %cst_13 = arith.constant dense<0.000000e+00> : vector<64x4xf32>
    %14 = tpu.matmul %8, %13, %cst_13 {dimension_numbers = #tpu.dot_dimension_numbers<[1], [0], [0], [1], [0, 0, 1, 1], [], []>} : vector<64x12xf32>, vector<12x4xf32>, vector<64x4xf32> -> vector<64x4xf32>
    %15 = arith.addf %11, %14 : vector<64x4xf32>
    %c2 = arith.constant 2 : index
    %c0_14 = arith.constant 0 : index
    %c0_15 = arith.constant 0 : index
    %16 = vector.load %arg4[%c2, %c0_14, %c0_15] : memref<3x12x4xf32, #tpu.memory_space<vmem>>, vector<1x12x4xf32>
    %17 = vector.shape_cast %16 : vector<1x12x4xf32> to vector<12x4xf32>
    %cst_16 = arith.constant dense<0.000000e+00> : vector<64x4xf32>
    %18 = tpu.matmul %5, %17, %cst_16 {dimension_numbers = #tpu.dot_dimension_numbers<[1], [0], [0], [1], [0, 0, 1, 1], [], []>} : vector<64x12xf32>, vector<12x4xf32>, vector<64x4xf32> -> vector<64x4xf32>
    %19 = arith.addf %15, %18 : vector<64x4xf32>
    %c0_17 = arith.constant 0 : index
    %c0_18 = arith.constant 0 : index
    %20 = vector.load %arg5[%c0_17, %c0_18] : memref<1x4xf32, #tpu.memory_space<vmem>>, vector<1x4xf32>
    %21 = vector.broadcast %20 : vector<1x4xf32> to vector<64x4xf32>
    %22 = arith.addf %19, %21 : vector<64x4xf32>
    %23 = vector.shape_cast %22 : vector<64x4xf32> to vector<8x8x4xf32>
    %c0_19 = arith.constant 0 : index
    %c0_20 = arith.constant 0 : index
    %c0_21 = arith.constant 0 : index
    %c0_22 = arith.constant 0 : index
    %24 = vector.load %arg6[%c0_19, %c0_20, %c0_21, %c0_22] : memref<1x8x8x4xf32, #tpu.memory_space<vmem>>, vector<1x8x8x4xf32>
    %25 = vector.shape_cast %24 : vector<1x8x8x4xf32> to vector<8x8x4xf32>
    %26 = vector.shape_cast %23 : vector<8x8x4xf32> to vector<1x8x8x4xf32>
    tpu.vector_store %arg6[%c0_19, %c0_20, %c0_21, %c0_22], %26 {strides = array<i32>} : memref<1x8x8x4xf32, #tpu.memory_space<vmem>>, vector<1x8x8x4xf32>,
    return
  }
  func.func @transform_0(%arg0: i32, %arg1: i32) -> (i32, i32, i32, i32, i32) {
    %c0_i32 = arith.constant 0 : i32
    %c0_i32_0 = arith.constant 0 : i32
    %c0_i32_1 = arith.constant 0 : i32
    %c0_i32_2 = arith.constant 0 : i32
    return %arg0, %arg1, %c0_i32, %c0_i32_0, %c0_i32_1 : i32, i32, i32, i32, i32
  }
  func.func @transform_1(%arg0: i32, %arg1: i32) -> (i32, i32, i32, i32) {
    %c0_i32 = arith.constant 0 : i32
    %c0_i32_0 = arith.constant 0 : i32
    %c0_i32_1 = arith.constant 0 : i32
    return %arg0, %arg1, %c0_i32, %c0_i32_0 : i32, i32, i32, i32
  }
  func.func @transform_2(%arg0: i32, %arg1: i32) -> (i32, i32, i32) {
    %c0_i32 = arith.constant 0 : i32
    %c0_i32_0 = arith.constant 0 : i32
    %c0_i32_1 = arith.constant 0 : i32
    %c0_i32_2 = arith.constant 0 : i32
    return %c0_i32, %c0_i32_0, %c0_i32_1 : i32, i32, i32
  }
  func.func @transform_3(%arg0: i32, %arg1: i32) -> (i32, i32) {
    %c0_i32 = arith.constant 0 : i32
    %c0_i32_0 = arith.constant 0 : i32
    %c0_i32_1 = arith.constant 0 : i32
    return %c0_i32, %c0_i32_0 : i32, i32
  }
  func.func @transform_4(%arg0: i32, %arg1: i32) -> (i32, i32, i32, i32) {
    %c0_i32 = arith.constant 0 : i32
    %c0_i32_0 = arith.constant 0 : i32
    %c0_i32_1 = arith.constant 0 : i32
    return %arg0, %arg1, %c0_i32, %c0_i32_0 : i32, i32, i32, i32
  }
}

</mosaic_0001>

<llo_original>
// kernel: downsample.1
$region0: #{downsample.1}
  #allocation0 [shape = 'u32[]', space=smem, size = 0x4, offset = 0x4, fixed_abs, tag = 'smem constant byte address 0x4 - core index']
  #allocation1 [shape = 'u32[144,128]{1,0:T(1,128)}', space=vmem, size = 0x12000, scoped, tag = 'internal scratch']
  %s0 = inlined_call_operand.vmem [shape: f32[2,1,9,8,12], index: 0, kind: input, shape index: {}]
  %s1 = inlined_call_operand.vmem [shape: f32[2,8,8,12], index: 1, kind: input, shape index: {}]
  %s2 = inlined_call_operand.vmem [shape: f32[3,12,4], index: 2, kind: input, shape index: {}]
  %s3 = inlined_call_operand.vmem [shape: f32[1,4], index: 3, kind: input, shape index: {}]
  %s4 = inlined_call_operand.vmem [shape: f32[2,8,8,4], index: 4, kind: output, shape index: {}]
  %s5 = sld [smem:[#allocation0]]
  $region49: #{downsample.1} parent=0
    _
  %s7 = ssub.s32 1, %s5
  %s8 = scalar_select 0, %s7, %s5
  loop: start=0, step=1, limit=4
  $region2: #{downsample.1} parent=0 // loop_pre_header
    _
  $region3: #{downsample.1} parent=0 // loop_header
    %s10 = sphi 0, %s14
    %p11 = scmp.ge.s32.totalorder %s10, 4
    %s17 = sphi 0, %s29
    %s18 = sphi 0, %s25
    %s19 = sphi 0, %s17
    %s20 = sphi 0, %s18
    %s21 = sphi 0, %s19
    %s22 = sphi 0, %s20
    %s34 = sphi 0, %s36
    %s37 = sphi 0, %s34
    %s38 = sphi 0, %s37
    %s54 = sphi 0, %s38
    %s62 = sphi 0, %s64
    %s65 = sphi 0, %s62
    %s66 = sphi 0, %s65
    %s82 = sphi 0, %s66
    %s86 = sphi 0, %s86
    %s88 = sphi 0, %s86
    %s89 = sphi 0, %s88
    %s103 = sphi 0, %s89
    %s107 = sphi 0, %s107
    %s109 = sphi 0, %s107
    %s110 = sphi 0, %s109
    %s124 = sphi 0, %s110
    %s132 = sphi 0, %s134
    %s135 = sphi 0, %s132
    %s136 = sphi 0, %s135
    %s152 = sphi 0, %s136
  $region4: #{downsample.1} parent=0 // loop_header_branch
    %13 = sbr.rel (%p11) target = $region8
  $region5: #{downsample.1} parent=0 // loop_body
    %s15 = ssub.s32 %s10, 1
    %s16 = ssub.s32 %s10, 2
    %s23 = sadd.s32 1, %s18
    %p24 = scmp.ge.s32.totalorder %s23, 1
    %s25 = scalar_select %p24, 0, %s23
    %s26 = sadd.s32 1, %s17
    %s27 = scalar_select %p24, %s26, %s17
    %p28 = scmp.ge.s32.totalorder %s27, 2
    %s29 = scalar_select %p28, 0, %s27
    %s30 = ssub.s32 %s17, %s29
    %s31 = ssub.s32 %s18, %s25
    %s32 = sor.u32 %s30, %s31
    %p33 = scmp.eq.s32.totalorder %s32, 0
    %s35 = sadd.s32 %s34, 1
    %s36 = scalar_select %p33, %s34, %s35
    %p39 = pneg %p33
    %p40 = scmp.eq.s32.totalorder %s10, 1
    %p41 = por %p39, %p40
    %p42 = scmp.ne.s32.totalorder %s34, %s37
    %p43 = scmp.eq.s32.totalorder %s10, 0
    %p44 = por %p42, %p43
    %p45 = scmp.ne.s32.totalorder %s34, %s37
    %p46 = scmp.eq.s32.totalorder %s15, 1
    %p47 = por %p45, %p46
    %p48 = scmp.ne.s32.totalorder %s37, %s38
    %p49 = scmp.eq.s32.totalorder %s15, 0
    %p50 = por %p48, %p49
    %p51 = scmp.ne.s32.totalorder %s37, %s38
    %p52 = scmp.eq.s32.totalorder %s16, 1
    %p53 = por %p51, %p52
    %p55 = scmp.ne.s32.totalorder %s38, %s54
    %p56 = scmp.eq.s32.totalorder %s16, 0
    %p57 = por %p55, %p56
    %s58 = ssub.s32 %s17, %s29
    %s59 = ssub.s32 %s18, %s25
    %s60 = sor.u32 %s58, %s59
    %p61 = scmp.eq.s32.totalorder %s60, 0
    %s63 = sadd.s32 %s62, 1
    %s64 = scalar_select %p61, %s62, %s63
    %p67 = pneg %p61
    %p68 = scmp.eq.s32.totalorder %s10, 1
    %p69 = por %p67, %p68
    %p70 = scmp.ne.s32.totalorder %s62, %s65
    %p71 = scmp.eq.s32.totalorder %s10, 0
    %p72 = por %p70, %p71
    %p73 = scmp.ne.s32.totalorder %s62, %s65
    %p74 = scmp.eq.s32.totalorder %s15, 1
    %p75 = por %p73, %p74
    %p76 = scmp.ne.s32.totalorder %s65, %s66
    %p77 = scmp.eq.s32.totalorder %s15, 0
    %p78 = por %p76, %p77
    %p79 = scmp.ne.s32.totalorder %s65, %s66
    %p80 = scmp.eq.s32.totalorder %s16, 1
    %p81 = por %p79, %p80
    %p83 = scmp.ne.s32.totalorder %s66, %s82
    %p84 = scmp.eq.s32.totalorder %s16, 0
    %p85 = por %p83, %p84
    %s87 = sadd.s32 %s86, 1
    %p90 = scmp.eq.s32.totalorder %s10, 1
    %p91 = scmp.ne.s32.totalorder %s86, %s88
    %p92 = scmp.eq.s32.totalorder %s10, 0
    %p93 = por %p91, %p92
    %p94 = scmp.ne.s32.totalorder %s86, %s88
    %p95 = scmp.eq.s32.totalorder %s15, 1
    %p96 = por %p94, %p95
    %p97 = scmp.ne.s32.totalorder %s88, %s89
    %p98 = scmp.eq.s32.totalorder %s15, 0
    %p99 = por %p97, %p98
    %p100 = scmp.ne.s32.totalorder %s88, %s89
    %p101 = scmp.eq.s32.totalorder %s16, 1
    %p102 = por %p100, %p101
    %p104 = scmp.ne.s32.totalorder %s89, %s103
    %p105 = scmp.eq.s32.totalorder %s16, 0
    %p106 = por %p104, %p105
    %s108 = sadd.s32 %s107, 1
    %p111 = scmp.eq.s32.totalorder %s10, 1
    %p112 = scmp.ne.s32.totalorder %s107, %s109
    %p113 = scmp.eq.s32.totalorder %s10, 0
    %p114 = por %p112, %p113
    %p115 = scmp.ne.s32.totalorder %s107, %s109
    %p116 = scmp.eq.s32.totalorder %s15, 1
    %p117 = por %p115, %p116
    %p118 = scmp.ne.s32.totalorder %s109, %s110
    %p119 = scmp.eq.s32.totalorder %s15, 0
    %p120 = por %p118, %p119
    %p121 = scmp.ne.s32.totalorder %s109, %s110
    %p122 = scmp.eq.s32.totalorder %s16, 1
    %p123 = por %p121, %p122
    %p125 = scmp.ne.s32.totalorder %s110, %s124
    %p126 = scmp.eq.s32.totalorder %s16, 0
    %p127 = por %p125, %p126
    %s128 = ssub.s32 %s17, %s29
    %s129 = ssub.s32 %s18, %s25
    %s130 = sor.u32 %s128, %s129
    %p131 = scmp.eq.s32.totalorder %s130, 0
    %s133 = sadd.s32 %s132, 1
    %s134 = scalar_select %p131, %s132, %s133
    %p137 = pneg %p131
    %p138 = scmp.eq.s32.totalorder %s10, 1
    %p139 = por %p137, %p138
    %p140 = scmp.ne.s32.totalorder %s132, %s135
    %p141 = scmp.eq.s32.totalorder %s10, 0
    %p142 = por %p140, %p141
    %p143 = scmp.ne.s32.totalorder %s132, %s135
    %p144 = scmp.eq.s32.totalorder %s15, 1
    %p145 = por %p143, %p144
    %p146 = scmp.ne.s32.totalorder %s135, %s136
    %p147 = scmp.eq.s32.totalorder %s15, 0
    %p148 = por %p146, %p147
    %p149 = scmp.ne.s32.totalorder %s135, %s136
    %p150 = scmp.eq.s32.totalorder %s16, 1
    %p151 = por %p149, %p150
    %p153 = scmp.ne.s32.totalorder %s136, %s152
    %p154 = scmp.eq.s32.totalorder %s16, 0
    %p155 = por %p153, %p154
    %p156 = scmp.le.s32.totalorder 1, %s10
    %p157 = scmp.lt.s32.totalorder %s10, 3
    %p158 = pnand %p156, %p157
    %p159 = pneg %p158
    // Predicated region
    $region9: #{downsample.1} parent=5 // pred_check
      _
    $region10: #{downsample.1} parent=5 // pred_check_branch
      %161 = sbr.rel (%p158) target = $region12
    $region11: #{downsample.1} parent=5 // pred_region
      %s162 = ssub.s32 %s10, 1
      // Predicated region
      $region13: #{downsample.1} parent=11 // pred_check
        %p163 = pneg %p99
      $region14: #{downsample.1} parent=11 // pred_check_branch
        %165 = sbr.rel (%p163) target = $region16
      $region15: #{downsample.1} parent=11 // pred_region
        _
      $region16: #{downsample.1} parent=11 // pred_fallthru
        _
      // Predicated region
      $region17: #{downsample.1} parent=11 // pred_check
        %p166 = pneg %p120
      $region18: #{downsample.1} parent=11 // pred_check_branch
        %168 = sbr.rel (%p166) target = $region20
      $region19: #{downsample.1} parent=11 // pred_region
        _
      $region20: #{downsample.1} parent=11 // pred_fallthru
        _
    $region12: #{downsample.1} parent=5 // pred_fallthru
      _
    %p169 = scmp.lt.s32.totalorder %s10, 2
    // Predicated region
    $region21: #{downsample.1} parent=5 // pred_check
      %p170 = pneg %p169
    $region22: #{downsample.1} parent=5 // pred_check_branch
      %172 = sbr.rel (%p170) target = $region24
    $region23: #{downsample.1} parent=5 // pred_region
      // Predicated region
      $region25: #{downsample.1} parent=23 // pred_check
        %p173 = pneg %p44
      $region26: #{downsample.1} parent=23 // pred_check_branch
        %175 = sbr.rel (%p173) target = $region28
      $region27: #{downsample.1} parent=23 // pred_region
        %p176 = scmp.lt.s32.totalorder %s17, 1
        %s177 = scalar_select %p176, %s17, 1
        %p178 = scmp.lt.s32.totalorder %s18, 0
        %s179 = scalar_select %p178, %s18, 0
        %s180 = smul.addr %s179, 9
        %s181 = smul.addr %s177, 9
        %s182 = sadd.s32 %s180, %s181
        %s183 = smul.addr %s182, 8
        %s184 = scalar_lea.vmem %s0, %s183
      $region28: #{downsample.1} parent=23 // pred_fallthru
        _
      // Predicated region
      $region29: #{downsample.1} parent=23 // pred_check
        %p185 = pneg %p72
      $region30: #{downsample.1} parent=23 // pred_check_branch
        %187 = sbr.rel (%p185) target = $region32
      $region31: #{downsample.1} parent=23 // pred_region
        %s188 = smul.u32 8, %s18
        %p189 = scmp.lt.s32.totalorder %s17, 1
        %s190 = scalar_select %p189, %s17, 1
        %p191 = scmp.lt.s32.totalorder %s188, 7
        %s192 = scalar_select %p191, %s188, 7
        %s193 = smul.addr %s190, 8
        %s194 = sadd.s32 %s192, %s193
        %s195 = smul.addr %s194, 8
        %s196 = scalar_lea.vmem %s1, %s195
        %s197 = smul.u32 8, %s18
      $region32: #{downsample.1} parent=23 // pred_fallthru
        _
    $region24: #{downsample.1} parent=5 // pred_fallthru
      _
    %p198 = scmp.le.s32.totalorder 1, %s10
    %p199 = scmp.lt.s32.totalorder %s10, 3
    %p200 = pnand %p198, %p199
    %p201 = pneg %p200
    // Predicated region
    $region33: #{downsample.1} parent=5 // pred_check
      _
    $region34: #{downsample.1} parent=5 // pred_check_branch
      %203 = sbr.rel (%p200) target = $region36
    $region35: #{downsample.1} parent=5 // pred_region
      %s204 = ssub.s32 %s10, 1
      %p205 = scmp.lt.s32.totalorder %s19, 1
      %s206 = scalar_select %p205, %s19, 1
      %p207 = scmp.lt.s32.totalorder %s20, 0
      %s208 = scalar_select %p207, %s20, 0
      %s209 = smul.addr %s208, 9
      %s210 = smul.addr %s206, 9
      %s211 = sadd.s32 %s209, %s210
      %s212 = smul.addr %s211, 8
      %s213 = scalar_lea.vmem %s0, %s212
      %p214 = pneg %p50
      %p215 = pneg %p47
      %s216 = smul.u32 8, %s20
      %p217 = scmp.lt.s32.totalorder %s19, 1
      %s218 = scalar_select %p217, %s19, 1
      %p219 = scmp.lt.s32.totalorder %s216, 7
      %s220 = scalar_select %p219, %s216, 7
      %s221 = smul.addr %s218, 8
      %s222 = sadd.s32 %s220, %s221
      %s223 = smul.addr %s222, 8
      %s224 = scalar_lea.vmem %s1, %s223
      %p225 = pneg %p78
      %p226 = pneg %p75
      %p227 = pneg %p99
      %p228 = pneg %p96
      %p229 = pneg %p120
      %p230 = pneg %p117
      %p231 = pneg %p148
      %p232 = pneg %p145
      %s233 = smul.u32 8, %s20
      %p234 = scmp.lt.s32.totalorder %s19, 1
      %s235 = scalar_select %p234, %s19, 1
      %p236 = scmp.lt.s32.totalorder %s233, 7
      %s237 = scalar_select %p236, %s233, 7
      %s238 = smul.addr %s235, 8
      %s239 = sadd.s32 %s237, %s238
      %s240 = smul.addr %s239, 8
      %s241 = scalar_lea.vmem %s4, %s240
      %p242 = scmp.lt.s32.totalorder %s19, 1
      %s243 = scalar_select %p242, %s19, 1
      %p244 = scmp.lt.s32.totalorder %s20, 0
      %s245 = scalar_select %p244, %s20, 0
      %s246 = smul.addr %s245, 9
      %s247 = smul.addr %s243, 9
      %s248 = sadd.s32 %s246, %s247
      %s249 = smul.addr %s248, 8
      %s250 = scalar_lea.vmem %s0, %s249
      %s251 = smul.u32 8, %s20
      %p252 = scmp.lt.s32.totalorder %s19, 1
      %s253 = scalar_select %p252, %s19, 1
      %p254 = scmp.lt.s32.totalorder %s251, 7
      %s255 = scalar_select %p254, %s251, 7
      %s256 = smul.addr %s253, 8
      %s257 = sadd.s32 %s255, %s256
      %s258 = smul.addr %s257, 8
      %s259 = scalar_lea.vmem %s1, %s258
      %s260 = smul.u32 8, %s20
      %s261 = smul.u32 8, %s20
      %p262 = scmp.lt.s32.totalorder %s19, 1
      %s263 = scalar_select %p262, %s19, 1
      %p264 = scmp.lt.s32.totalorder %s261, 7
      %s265 = scalar_select %p264, %s261, 7
      %s266 = smul.addr %s263, 8
      %s267 = sadd.s32 %s265, %s266
      %s268 = smul.addr %s267, 8
      %s269 = scalar_lea.vmem %s4, %s268
      %s270 = smul.u32 8, %s20
      %v271 = vld [vmem:[%s250] sm:$0xff]
      %v272 = vld [vmem:[%s250 + $0x8] sm:$0xff]
      %v273 = vld [vmem:[%s250 + $0x10] sm:$0xff]
      %v274 = vld [vmem:[%s250 + $0x18] sm:$0xff]
      %v275 = vld [vmem:[%s250 + $0x20] sm:$0xff]
      %v276 = vld [vmem:[%s250 + $0x28] sm:$0xff]
      %v277 = vld [vmem:[%s250 + $0x30] sm:$0xff]
      %v278 = vld [vmem:[%s250 + $0x38] sm:$0xff]
      %v279 = vld [vmem:[%s250 + $0x40] sm:$0xff]
      %v280 = vld [vmem:[%s259] sm:$0xff]
      %v281 = vld [vmem:[%s259 + $0x8] sm:$0xff]
      %v282 = vld [vmem:[%s259 + $0x10] sm:$0xff]
      %v283 = vld [vmem:[%s259 + $0x18] sm:$0xff]
      %v284 = vld [vmem:[%s259 + $0x20] sm:$0xff]
      %v285 = vld [vmem:[%s259 + $0x28] sm:$0xff]
      %v286 = vld [vmem:[%s259 + $0x30] sm:$0xff]
      %v287 = vld [vmem:[%s259 + $0x38] sm:$0xff]
      %v288 = vld [vmem:[%s2] sm:$0xff]
      %v289 = vld [vmem:[%s2 + $0x8] sm:$0xf]
      %s290 = scalar_lea.vmem %s2, 16
      %v291 = vld [vmem:[%s290] sm:$0xff]
      %v292 = vld [vmem:[%s290 + $0x8] sm:$0xf]
      %vm293 = vcmask 97280
      %v295 = vsel %vm293, %v280, 0
      %v298 = vsel %vm293, %v281, 0
      %v301 = vsel %vm293, %v282, 0
      %v304 = vsel %vm293, %v283, 0
      %v307 = vsel %vm293, %v284, 0
      %v310 = vsel %vm293, %v285, 0
      %v313 = vsel %vm293, %v286, 0
      %v316 = vsel %vm293, %v287, 0
      %vm318 = vcmask 1043456
      %v320 = vsel %vm318, %v292, 0
      %322 = vmatprep.subr.mxu0 0.0
      %323 = vmatpush1.msra.mxu0 %v291
      %324 = vmatprep.subr.mxu0 0.0
      %325 = vmatpush1.msra.mxu0 %v320
      %326 = vmatprep.subr.mxu0 0.0
      %327 = vmatpush1.msra.mxu0 0.0
      %328 = vmatprep.subr.mxu0 0.0
      %329 = vmatpush1.msra.mxu0 0.0
      %330 = vmatprep.subr.mxu0 0.0
      %331 = vmatpush1.msra.mxu0 0.0
      %332 = vmatprep.subr.mxu0 0.0
      %333 = vmatpush1.msra.mxu0 0.0
      %334 = vmatprep.subr.mxu0 0.0
      %335 = vmatpush1.msra.mxu0 0.0
      %336 = vmatprep.subr.mxu0 0.0
      %337 = vmatpush1.msra.mxu0 0.0
      %338 = vmatprep.subr.mxu0 0.0
      %339 = vmatpush1.msra.mxu0 0.0
      %340 = vmatprep.subr.mxu0 0.0
      %341 = vmatpush1.msra.mxu0 0.0
      %342 = vmatprep.subr.mxu0 0.0
      %343 = vmatpush1.msra.mxu0 0.0
      %344 = vmatprep.subr.mxu0 0.0
      %345 = vmatpush1.msra.mxu0 0.0
      %346 = vmatprep.subr.mxu0 0.0
      %347 = vmatpush1.msra.mxu0 0.0
      %348 = vmatprep.subr.mxu0 0.0
      %349 = vmatpush1.msra.mxu0 0.0
      %350 = vmatprep.subr.mxu0 0.0
      %351 = vmatpush1.msra.mxu0 0.0
      %352 = vmatprep.subr.mxu0 0.0
      %353 = vmatpush1.msra.mxu0 0.0
      %354 = vmatprep.subr.mxu0 0.0
      %355 = vmatpush1.msra.mxu0 0.0
      %356 = vmatprep.subr.mxu0 0.0
      %357 = vmatpush1.msra.mxu0 0.0
      %358 = vmatprep.subr.mxu0 0.0
      %359 = vmatpush1.msra.mxu0 0.0
      %360 = vmatprep.subr.mxu0 0.0
      %361 = vmatpush1.msra.mxu0 0.0
      %362 = vmatprep.subr.mxu0 0.0
      %363 = vmatpush1.msra.mxu0 0.0
      %364 = vmatprep.subr.mxu0 0.0
      %365 = vmatpush1.msra.mxu0 0.0
      %366 = vmatprep.subr.mxu0 0.0
      %367 = vmatpush1.msra.mxu0 0.0
      %368 = vmatprep.subr.mxu0 0.0
      %369 = vmatpush1.msra.mxu0 0.0
      %370 = vmatprep.subr.mxu0 0.0
      %371 = vmatpush1.msra.mxu0 0.0
      %372 = vmatprep.subr.mxu0 0.0
      %373 = vmatpush1.msra.mxu0 0.0
      %374 = vmatprep.subr.mxu0 0.0
      %375 = vmatpush1.msra.mxu0 0.0
      %376 = vmatprep.subr.mxu0 0.0
      %377 = vmatpush1.msra.mxu0 0.0
      %378 = vmatprep.subr.mxu0 0.0
      %379 = vmatpush1.msra.mxu0 0.0
      %380 = vmatprep.subr.mxu0 0.0
      %381 = vmatpush1.msra.mxu0 0.0
      %382 = vmatprep.subr.mxu0 0.0
      %383 = vmatpush1.msra.mxu0 0.0
      %384 = vmatprep.subr.mxu0 0.0
      %385 = vmatpush1.msra.mxu0 0.0
      %386 = vmatprep.mubr.f32.mxu0 0.0
      %387 = vmatmul.mubr.f32.gmra.mrb[0].mxu0 %v295
      %v388 = vpop.f32.mrb[0].mxu0
      %v389 = vadd.f32 0.0, %v388
      %v390 = vpop.f32.mrb[0].mxu0
      %391 = vmatprep.mubr.f32.mxu0 0.0
      %392 = vmatmul.mubr.f32.gmra.mrb[0].mxu0 %v298
      %v393 = vpop.f32.mrb[0].mxu0
      %v394 = vadd.f32 0.0, %v393
      %v395 = vpop.f32.mrb[0].mxu0
      %396 = vmatprep.mubr.f32.mxu0 0.0
      %397 = vmatmul.mubr.f32.gmra.mrb[0].mxu0 %v301
      %v398 = vpop.f32.mrb[0].mxu0
      %v399 = vadd.f32 0.0, %v398
      %v400 = vpop.f32.mrb[0].mxu0
      %401 = vmatprep.mubr.f32.mxu0 0.0
      %402 = vmatmul.mubr.f32.gmra.mrb[0].mxu0 %v304
      %v403 = vpop.f32.mrb[0].mxu0
      %v404 = vadd.f32 0.0, %v403
      %v405 = vpop.f32.mrb[0].mxu0
      %406 = vmatprep.mubr.f32.mxu0 0.0
      %407 = vmatmul.mubr.f32.gmra.mrb[0].mxu0 %v307
      %v408 = vpop.f32.mrb[0].mxu0
      %v409 = vadd.f32 0.0, %v408
      %v410 = vpop.f32.mrb[0].mxu0
      %411 = vmatprep.mubr.f32.mxu0 0.0
      %412 = vmatmul.mubr.f32.gmra.mrb[0].mxu0 %v310
      %v413 = vpop.f32.mrb[0].mxu0
      %v414 = vadd.f32 0.0, %v413
      %v415 = vpop.f32.mrb[0].mxu0
      %416 = vmatprep.mubr.f32.mxu0 0.0
      %417 = vmatmul.mubr.f32.gmra.mrb[0].mxu0 %v313
      %v418 = vpop.f32.mrb[0].mxu0
      %v419 = vadd.f32 0.0, %v418
      %v420 = vpop.f32.mrb[0].mxu0
      %421 = vmatprep.mubr.f32.mxu0 0.0
      %422 = vmatmul.mubr.f32.gmra.mrb[0].mxu0 %v316
      %v423 = vpop.f32.mrb[0].mxu0
      %v424 = vadd.f32 0.0, %v423
      %v425 = vpop.f32.mrb[0].mxu0
      %426 = vdwg.mxu0
      %v428 = vsel %vm293, %v271, 0
      %v431 = vsel %vm293, %v272, 0
      %v434 = vsel %vm293, %v273, 0
      %v437 = vsel %vm293, %v274, 0
      %v440 = vsel %vm293, %v275, 0
      %v443 = vsel %vm293, %v276, 0
      %v446 = vsel %vm293, %v277, 0
      %v449 = vsel %vm293, %v278, 0
      %v452 = vsel %vm318, %v289, 0
      %454 = vmatprep.subr.mxu0 0.0
      %455 = vmatpush1.msra.mxu0 %v288
      %456 = vmatprep.subr.mxu0 0.0
      %457 = vmatpush1.msra.mxu0 %v452
      %458 = vmatprep.subr.mxu0 0.0
      %459 = vmatpush1.msra.mxu0 0.0
      %460 = vmatprep.subr.mxu0 0.0
      %461 = vmatpush1.msra.mxu0 0.0
      %462 = vmatprep.subr.mxu0 0.0
      %463 = vmatpush1.msra.mxu0 0.0
      %464 = vmatprep.subr.mxu0 0.0
      %465 = vmatpush1.msra.mxu0 0.0
      %466 = vmatprep.subr.mxu0 0.0
      %467 = vmatpush1.msra.mxu0 0.0
      %468 = vmatprep.subr.mxu0 0.0
      %469 = vmatpush1.msra.mxu0 0.0
      %470 = vmatprep.subr.mxu0 0.0
      %471 = vmatpush1.msra.mxu0 0.0
      %472 = vmatprep.subr.mxu0 0.0
      %473 = vmatpush1.msra.mxu0 0.0
      %474 = vmatprep.subr.mxu0 0.0
      %475 = vmatpush1.msra.mxu0 0.0
      %476 = vmatprep.subr.mxu0 0.0
      %477 = vmatpush1.msra.mxu0 0.0
      %478 = vmatprep.subr.mxu0 0.0
      %479 = vmatpush1.msra.mxu0 0.0
      %480 = vmatprep.subr.mxu0 0.0
      %481 = vmatpush1.msra.mxu0 0.0
      %482 = vmatprep.subr.mxu0 0.0
      %483 = vmatpush1.msra.mxu0 0.0
      %484 = vmatprep.subr.mxu0 0.0
      %485 = vmatpush1.msra.mxu0 0.0
      %486 = vmatprep.subr.mxu0 0.0
      %487 = vmatpush1.msra.mxu0 0.0
      %488 = vmatprep.subr.mxu0 0.0
      %489 = vmatpush1.msra.mxu0 0.0
      %490 = vmatprep.subr.mxu0 0.0
      %491 = vmatpush1.msra.mxu0 0.0
      %492 = vmatprep.subr.mxu0 0.0
      %493 = vmatpush1.msra.mxu0 0.0
      %494 = vmatprep.subr.mxu0 0.0
      %495 = vmatpush1.msra.mxu0 0.0
      %496 = vmatprep.subr.mxu0 0.0
      %497 = vmatpush1.msra.mxu0 0.0
      %498 = vmatprep.subr.mxu0 0.0
      %499 = vmatpush1.msra.mxu0 0.0
      %500 = vmatprep.subr.mxu0 0.0
      %501 = vmatpush1.msra.mxu0 0.0
      %502 = vmatprep.subr.mxu0 0.0
      %503 = vmatpush1.msra.mxu0 0.0
      %504 = vmatprep.subr.mxu0 0.0
      %505 = vmatpush1.msra.mxu0 0.0
      %506 = vmatprep.subr.mxu0 0.0
      %507 = vmatpush1.msra.mxu0 0.0
      %508 = vmatprep.subr.mxu0 0.0
      %509 = vmatpush1.msra.mxu0 0.0
      %510 = vmatprep.subr.mxu0 0.0
      %511 = vmatpush1.msra.mxu0 0.0
      %512 = vmatprep.subr.mxu0 0.0
      %513 = vmatpush1.msra.mxu0 0.0
      %514 = vmatprep.subr.mxu0 0.0
      %515 = vmatpush1.msra.mxu0 0.0
      %516 = vmatprep.subr.mxu0 0.0
      %517 = vmatpush1.msra.mxu0 0.0
      %518 = vmatprep.mubr.f32.mxu0 0.0
      %519 = vmatmul.mubr.f32.gmra.mrb[0].mxu0 %v428
      %v520 = vpop.f32.mrb[0].mxu0
      %v521 = vadd.f32 %v389, %v520
      %v522 = vpop.f32.mrb[0].mxu0
      %523 = vmatprep.mubr.f32.mxu0 0.0
      %524 = vmatmul.mubr.f32.gmra.mrb[0].mxu0 %v431
      %v525 = vpop.f32.mrb[0].mxu0
      %v526 = vadd.f32 %v394, %v525
      %v527 = vpop.f32.mrb[0].mxu0
      %528 = vmatprep.mubr.f32.mxu0 0.0
      %529 = vmatmul.mubr.f32.gmra.mrb[0].mxu0 %v434
      %v530 = vpop.f32.mrb[0].mxu0
      %v531 = vadd.f32 %v399, %v530
      %v532 = vpop.f32.mrb[0].mxu0
      %533 = vmatprep.mubr.f32.mxu0 0.0
      %534 = vmatmul.mubr.f32.gmra.mrb[0].mxu0 %v437
      %v535 = vpop.f32.mrb[0].mxu0
      %v536 = vadd.f32 %v404, %v535
      %v537 = vpop.f32.mrb[0].mxu0
      %538 = vmatprep.mubr.f32.mxu0 0.0
      %539 = vmatmul.mubr.f32.gmra.mrb[0].mxu0 %v440
      %v540 = vpop.f32.mrb[0].mxu0
      %v541 = vadd.f32 %v409, %v540
      %v542 = vpop.f32.mrb[0].mxu0
      %543 = vmatprep.mubr.f32.mxu0 0.0
      %544 = vmatmul.mubr.f32.gmra.mrb[0].mxu0 %v443
      %v545 = vpop.f32.mrb[0].mxu0
      %v546 = vadd.f32 %v414, %v545
      %v547 = vpop.f32.mrb[0].mxu0
      %548 = vmatprep.mubr.f32.mxu0 0.0
      %549 = vmatmul.mubr.f32.gmra.mrb[0].mxu0 %v446
      %v550 = vpop.f32.mrb[0].mxu0
      %v551 = vadd.f32 %v419, %v550
      %v552 = vpop.f32.mrb[0].mxu0
      %553 = vmatprep.mubr.f32.mxu0 0.0
      %554 = vmatmul.mubr.f32.gmra.mrb[0].mxu0 %v449
      %v555 = vpop.f32.mrb[0].mxu0
      %v556 = vadd.f32 %v424, %v555
      %v557 = vpop.f32.mrb[0].mxu0
      %558 = vdwg.mxu0
      %s559 = scalar_lea.vmem %s2, 32
      %v560 = vld [vmem:[%s559] sm:$0xff]
      %v561 = vld [vmem:[%s559 + $0x8] sm:$0xf]
      %v563 = vsel %vm293, %v279, 0
      %v566 = vsel %vm318, %v561, 0
      %568 = vmatprep.subr.mxu0 0.0
      %569 = vmatpush1.msra.mxu0 %v560
      %570 = vmatprep.subr.mxu0 0.0
      %571 = vmatpush1.msra.mxu0 %v566
      %572 = vmatprep.subr.mxu0 0.0
      %573 = vmatpush1.msra.mxu0 0.0
      %574 = vmatprep.subr.mxu0 0.0
      %575 = vmatpush1.msra.mxu0 0.0
      %576 = vmatprep.subr.mxu0 0.0
      %577 = vmatpush1.msra.mxu0 0.0
      %578 = vmatprep.subr.mxu0 0.0
      %579 = vmatpush1.msra.mxu0 0.0
      %580 = vmatprep.subr.mxu0 0.0
      %581 = vmatpush1.msra.mxu0 0.0
      %582 = vmatprep.subr.mxu0 0.0
      %583 = vmatpush1.msra.mxu0 0.0
      %584 = vmatprep.subr.mxu0 0.0
      %585 = vmatpush1.msra.mxu0 0.0
      %586 = vmatprep.subr.mxu0 0.0
      %587 = vmatpush1.msra.mxu0 0.0
      %588 = vmatprep.subr.mxu0 0.0
      %589 = vmatpush1.msra.mxu0 0.0
      %590 = vmatprep.subr.mxu0 0.0
      %591 = vmatpush1.msra.mxu0 0.0
      %592 = vmatprep.subr.mxu0 0.0
      %593 = vmatpush1.msra.mxu0 0.0
      %594 = vmatprep.subr.mxu0 0.0
      %595 = vmatpush1.msra.mxu0 0.0
      %596 = vmatprep.subr.mxu0 0.0
      %597 = vmatpush1.msra.mxu0 0.0
      %598 = vmatprep.subr.mxu0 0.0
      %599 = vmatpush1.msra.mxu0 0.0
      %600 = vmatprep.subr.mxu0 0.0
      %601 = vmatpush1.msra.mxu0 0.0
      %602 = vmatprep.subr.mxu0 0.0
      %603 = vmatpush1.msra.mxu0 0.0
      %604 = vmatprep.subr.mxu0 0.0
      %605 = vmatpush1.msra.mxu0 0.0
      %606 = vmatprep.subr.mxu0 0.0
      %607 = vmatpush1.msra.mxu0 0.0
      %608 = vmatprep.subr.mxu0 0.0
      %609 = vmatpush1.msra.mxu0 0.0
      %610 = vmatprep.subr.mxu0 0.0
      %611 = vmatpush1.msra.mxu0 0.0
      %612 = vmatprep.subr.mxu0 0.0
      %613 = vmatpush1.msra.mxu0 0.0
      %614 = vmatprep.subr.mxu0 0.0
      %615 = vmatpush1.msra.mxu0 0.0
      %616 = vmatprep.subr.mxu0 0.0
      %617 = vmatpush1.msra.mxu0 0.0
      %618 = vmatprep.subr.mxu0 0.0
      %619 = vmatpush1.msra.mxu0 0.0
      %620 = vmatprep.subr.mxu0 0.0
      %621 = vmatpush1.msra.mxu0 0.0
      %622 = vmatprep.subr.mxu0 0.0
      %623 = vmatpush1.msra.mxu0 0.0
      %624 = vmatprep.subr.mxu0 0.0
      %625 = vmatpush1.msra.mxu0 0.0
      %626 = vmatprep.subr.mxu0 0.0
      %627 = vmatpush1.msra.mxu0 0.0
      %628 = vmatprep.subr.mxu0 0.0
      %629 = vmatpush1.msra.mxu0 0.0
      %630 = vmatprep.subr.mxu0 0.0
      %631 = vmatpush1.msra.mxu0 0.0
      %632 = vmatprep.mubr.f32.mxu0 0.0
      %633 = vmatmul.mubr.f32.gmra.mrb[0].mxu0 %v431
      %v634 = vpop.f32.mrb[0].mxu0
      %v635 = vadd.f32 0.0, %v634
      %v636 = vpop.f32.mrb[0].mxu0
      %637 = vmatprep.mubr.f32.mxu0 0.0
      %638 = vmatmul.mubr.f32.gmra.mrb[0].mxu0 %v434
      %v639 = vpop.f32.mrb[0].mxu0
      %v640 = vadd.f32 0.0, %v639
      %v641 = vpop.f32.mrb[0].mxu0
      %642 = vmatprep.mubr.f32.mxu0 0.0
      %643 = vmatmul.mubr.f32.gmra.mrb[0].mxu0 %v437
      %v644 = vpop.f32.mrb[0].mxu0
      %v645 = vadd.f32 0.0, %v644
      %v646 = vpop.f32.mrb[0].mxu0
      %647 = vmatprep.mubr.f32.mxu0 0.0
      %648 = vmatmul.mubr.f32.gmra.mrb[0].mxu0 %v440
      %v649 = vpop.f32.mrb[0].mxu0
      %v650 = vadd.f32 0.0, %v649
      %v651 = vpop.f32.mrb[0].mxu0
      %652 = vmatprep.mubr.f32.mxu0 0.0
      %653 = vmatmul.mubr.f32.gmra.mrb[0].mxu0 %v443
      %v654 = vpop.f32.mrb[0].mxu0
      %v655 = vadd.f32 0.0, %v654
      %v656 = vpop.f32.mrb[0].mxu0
      %657 = vmatprep.mubr.f32.mxu0 0.0
      %658 = vmatmul.mubr.f32.gmra.mrb[0].mxu0 %v446
      %v659 = vpop.f32.mrb[0].mxu0
      %v660 = vadd.f32 0.0, %v659
      %v661 = vpop.f32.mrb[0].mxu0
      %662 = vmatprep.mubr.f32.mxu0 0.0
      %663 = vmatmul.mubr.f32.gmra.mrb[0].mxu0 %v449
      %v664 = vpop.f32.mrb[0].mxu0
      %v665 = vadd.f32 0.0, %v664
      %v666 = vpop.f32.mrb[0].mxu0
      %667 = vmatprep.mubr.f32.mxu0 0.0
      %668 = vmatmul.mubr.f32.gmra.mrb[0].mxu0 %v563
      %v669 = vpop.f32.mrb[0].mxu0
      %v670 = vadd.f32 0.0, %v669
      %v671 = vpop.f32.mrb[0].mxu0
      %672 = vdwg.mxu0
      %v673 = vadd.f32 %v521, %v635
      %v674 = vadd.f32 %v526, %v640
      %v675 = vadd.f32 %v531, %v645
      %v676 = vadd.f32 %v536, %v650
      %v677 = vadd.f32 %v541, %v655
      %v678 = vadd.f32 %v546, %v660
      %v679 = vadd.f32 %v551, %v665
      %v680 = vadd.f32 %v556, %v670
      %v681 = vld [vmem:[%s3] sm:$0x1]
      %v683 = vlaneseq
      %v684 = vshrl.u32 %v683, 7
      %v685 = vsub.s32 0, %v684
      %v686 = vrot.slane %v681, %v685
      %v688 = vadd.f32 %v673, %v686
      %v689 = vadd.f32 %v674, %v686
      %v690 = vadd.f32 %v675, %v686
      %v691 = vadd.f32 %v676, %v686
      %v692 = vadd.f32 %v677, %v686
      %v693 = vadd.f32 %v678, %v686
      %v694 = vadd.f32 %v679, %v686
      %v695 = vadd.f32 %v680, %v686
      %vm696 = vcmask 31744
      %697 = vst.msk [vmem:[%s269] sm:$0xff] %vm696, %v688
      %698 = vst.msk [vmem:[%s269 + $0x8] sm:$0xff] %vm696, %v689
      %699 = vst.msk [vmem:[%s269 + $0x10] sm:$0xff] %vm696, %v690
      %700 = vst.msk [vmem:[%s269 + $0x18] sm:$0xff] %vm696, %v691
      %701 = vst.msk [vmem:[%s269 + $0x20] sm:$0xff] %vm696, %v692
      %702 = vst.msk [vmem:[%s269 + $0x28] sm:$0xff] %vm696, %v693
      %703 = vst.msk [vmem:[%s269 + $0x30] sm:$0xff] %vm696, %v694
      %704 = vst.msk [vmem:[%s269 + $0x38] sm:$0xff] %vm696, %v695
      %s705 = smul.u32 8, %s20
      %p706 = scmp.lt.s32.totalorder %s19, 1
      %s707 = scalar_select %p706, %s19, 1
      %p708 = scmp.lt.s32.totalorder %s705, 7
      %s709 = scalar_select %p708, %s705, 7
      %s710 = smul.addr %s707, 8
      %s711 = sadd.s32 %s709, %s710
      %s712 = smul.addr %s711, 8
      %s713 = scalar_lea.vmem %s4, %s712
      // Predicated region
      $region37: #{downsample.1} parent=35 // pred_check
        %p714 = pneg %p145
      $region38: #{downsample.1} parent=35 // pred_check_branch
        %716 = sbr.rel (%p714) target = $region40
      $region39: #{downsample.1} parent=35 // pred_region
        %s717 = smul.u32 8, %s20
      $region40: #{downsample.1} parent=35 // pred_fallthru
        _
    $region36: #{downsample.1} parent=5 // pred_fallthru
      _
    %p718 = scmp.le.s32.totalorder 2, %s10
    // Predicated region
    $region41: #{downsample.1} parent=5 // pred_check
      %p719 = pneg %p718
    $region42: #{downsample.1} parent=5 // pred_check_branch
      %721 = sbr.rel (%p719) target = $region44
    $region43: #{downsample.1} parent=5 // pred_region
      %s722 = ssub.s32 %s10, 2
      // Predicated region
      $region45: #{downsample.1} parent=43 // pred_check
        %p723 = pneg %p151
      $region46: #{downsample.1} parent=43 // pred_check_branch
        %725 = sbr.rel (%p723) target = $region48
      $region47: #{downsample.1} parent=43 // pred_region
        %s726 = smul.u32 8, %s22
        %p727 = scmp.lt.s32.totalorder %s21, 1
        %s728 = scalar_select %p727, %s21, 1
        %p729 = scmp.lt.s32.totalorder %s726, 7
        %s730 = scalar_select %p729, %s726, 7
        %s731 = smul.addr %s728, 8
        %s732 = sadd.s32 %s730, %s731
        %s733 = smul.addr %s732, 8
        %s734 = scalar_lea.vmem %s4, %s733
      $region48: #{downsample.1} parent=43 // pred_fallthru
        _
    $region44: #{downsample.1} parent=5 // pred_fallthru
      _
  $region6: #{downsample.1} parent=0 // loop_footer
    %s14 = sadd.s32 1, %s10
  $region7: #{downsample.1} parent=0 // loop_footer_branch
    %9 = sbr.rel target = $region3
  $region8: #{downsample.1} parent=0 // loop_exit
    _

</llo_original>
